<compile_context>
chip_gen: v6e
topology: v6e:2x2x1
jax: 0.10.0
libtpu: 0.0.40
codegen_flags: <defaults>
</compile_context>

<pallas_src>
import functools

import jax
import jax.numpy as jnp
from jax.experimental import pallas as pl
from jax.experimental.pallas import tpu as pltpu


def _shift_rows(x, d):
    """y[:, t, :] = x[:, t + d, :] for 0 <= t + d < L, zero otherwise (d static)."""
    if d == 0:
        return x
    tb, _L, C = x.shape
    if d > 0:
        pad = jnp.zeros((tb, d, C), x.dtype)
        return jnp.concatenate([x[:, d:, :], pad], axis=1)
    pad = jnp.zeros((tb, -d, C), x.dtype)
    return jnp.concatenate([pad, x[:, :d, :]], axis=1)


def _msanr_arl_kernel(kernel_list, doc_ref, wproj_ref, wscore_ref, mrep_ref,
                      attn_ref, rep_ref):
    """One grid step == one batch tile.

    doc_ref    : (tb, L, E)                 document tile
    wproj_ref  : (E, A*h1)                  aspProj repacked, all aspects fused
    wscore_ref : (A*h1, (n_shift+1)*A)      block-diagonal aspect-embedding / filter weights
    mrep_ref   : (A, A*h1)                  aspect replication matrix
    attn_ref   : (tb, A, L)                 batch_aspAttn tile (L lane-dense)
    rep_ref    : (tb, A*h1)                 batch_aspRep tile (lane-flat)
    """
    tb, L, E = doc_ref.shape
    A, K = mrep_ref.shape                      # K = A * h1
    n_shift = sum(kernel_list)

    doc2 = doc_ref[...].reshape(tb * L, E)

    # One matmul: projected document for every aspect at once.
    proj = jnp.dot(doc2, wproj_ref[...], preferred_element_type=jnp.float32)   # (tb*L, K)
    # One matmul: all sliding-window partial scores + filter projections.
    S = jnp.dot(proj, wscore_ref[...], preferred_element_type=jnp.float32)     # (tb*L, NC)

    proj3 = proj.reshape(tb, L, K)
    S3 = S.reshape(tb, L, (n_shift + 1) * A)
    g = S3[:, :, n_shift * A:]                 # (tb, L, A): proj_doc . filter, per aspect

    combined = jnp.zeros((tb, L, A), jnp.float32)
    col = 0
    for c in kernel_list:
        left = (c - 1) // 2
        score = jnp.zeros((tb, L, A), jnp.float32)
        for j in range(c):
            score = score + _shift_rows(S3[:, :, col * A:(col + 1) * A], j - left)
            col += 1
        # softmax over the document-length dimension (torch dim=1)
        score = score - jnp.max(score, axis=1, keepdims=True)
        p = jnp.exp(score)
        attn = p * pl.reciprocal(jnp.sum(p, axis=1, keepdims=True), approx=True)
        # filter attention for this scale: fa == ctxRep . filterEmbed (ctxRep never built)
        fa = jnp.sum(attn * g, axis=1, keepdims=True)          # (tb, 1, A)
        combined = combined + attn * fa

    # batch_aspAttn[b, a, t] = sum_i fa_i[b,a] * attn_i[b,t,a]  -- lane-dense (L) store.
    attn_ref[...] = jnp.transpose(combined, (0, 2, 1))

    # batch_aspRep[b, a*h1+h] = sum_t combined[b,t,a] * proj[b,t,a*h1+h]
    expand = jnp.dot(combined.reshape(tb * L, A), mrep_ref[...],
                     preferred_element_type=jnp.float32).reshape(tb, L, K)
    rep_ref[...] = jnp.sum(expand * proj3, axis=1)             # (tb, K)


def msanr_arl_forward(doc, asp_proj, asp_embed_ws, filter_w, kernel_list, h1):
    """Pallas wrapper.

    doc          : (B, L, E) float32
    asp_proj     : (A, E, h1)
    asp_embed_ws : list of (A, c_i, h1), one per kernel size
    filter_w     : (A, 1, h1)
    returns (batch_aspAttn (B, A, L), batch_aspRep (B, A, h1))
    """
    B, L, E = doc.shape
    A = asp_proj.shape[0]
    K = A * h1
    kernel_list = tuple(int(c) for c in kernel_list)
    n_shift = sum(kernel_list)
    nc = (n_shift + 1) * A

    # ---- parameter re-packing (parameter-sized work only, done once by XLA) ----
    # W_proj[e, a*h1 + h] = aspProj[a, e, h]
    w_proj = jnp.transpose(asp_proj.astype(jnp.float32), (1, 0, 2)).reshape(E, K)

    eye_a = jnp.eye(A, dtype=jnp.float32)
    blocks = []
    for i, c in enumerate(kernel_list):
        w = asp_embed_ws[i].astype(jnp.float32)                # (A, c, h1)
        for j in range(c):
            # block-diagonal: [a*h1 + h, a'] = w[a, j, h] * delta(a, a')
            blocks.append(jnp.einsum('ah,ab->ahb', w[:, j, :], eye_a).reshape(K, A))
    blocks.append(jnp.einsum('ah,ab->ahb', filter_w[:, 0, :].astype(jnp.float32),
                             eye_a).reshape(K, A))
    w_score = jnp.concatenate(blocks, axis=1)                  # (K, nc)

    # aspect replication matrix: [a, a'*h1 + h] = delta(a, a')
    m_rep = jnp.repeat(eye_a, h1, axis=1)                      # (A, K)

    # ---- batch tiling (bounds the doc tile so it also fits v7x's smaller VMEM) ----
    if B <= 8:
        tb = B
    else:
        rows = max(8, (4 * 1024 * 1024) // (L * E * 4))        # ~4 MiB f32 doc tile
        tb = min((B // 8) * 8, (rows // 8) * 8, 256)
        tb = max(tb, 8)
    grid = (pl.cdiv(B, tb),)

    kernel = functools.partial(_msanr_arl_kernel, kernel_list)
    attn, rep = pl.pallas_call(
        kernel,
        grid=grid,
        in_specs=[
            pl.BlockSpec((tb, L, E), lambda b: (b, 0, 0)),
            pl.BlockSpec((E, K), lambda b: (0, 0)),      # constant block index ->
            pl.BlockSpec((K, nc), lambda b: (0, 0)),     # weights fetched once, stay
            pl.BlockSpec((A, K), lambda b: (0, 0)),      # resident in VMEM
        ],
        out_specs=(
            pl.BlockSpec((tb, A, L), lambda b: (b, 0, 0)),
            pl.BlockSpec((tb, K), lambda b: (b, 0)),
        ),
        out_shape=(
            jax.ShapeDtypeStruct((B, A, L), jnp.float32),
            jax.ShapeDtypeStruct((B, K), jnp.float32),
        ),
        compiler_params=pltpu.CompilerParams(
            dimension_semantics=("parallel",)),
    )(doc.astype(jnp.float32), w_proj, w_score, m_rep)

    # (B, A*h1) -> (B, A, h1): contiguous metadata-only reshape (no transpose, no copy).
    return attn, rep.reshape(B, A, h1)


def reference(doc, asp_proj, asp_embed_ws, filter_w, kernel_list, h1):
    """Pure-JAX reference mirroring the PyTorch forward semantics."""
    B, L, E = doc.shape
    A = asp_proj.shape[0]
    attns, reps = [], []
    for a in range(A):
        proj_doc = doc @ asp_proj[a]                       # (B, L, h1)
        ctx_attn, ctx_rep = [], []
        for i, c in enumerate(kernel_list):
            w = asp_embed_ws[i][a].reshape(-1)             # (c*h1,)
            left = (c - 1) // 2
            right = (c - 1) - left
            padded = jnp.pad(proj_doc, ((0, 0), (left, right), (0, 0)))
            score = jnp.zeros((B, L), jnp.float32)
            for j in range(c):
                score = score + padded[:, j:j + L, :] @ w[j * h1:(j + 1) * h1]
            attn = jax.nn.softmax(score, axis=1)
            rep = jnp.sum(proj_doc * attn[:, :, None], axis=1)
            ctx_attn.append(attn)
            ctx_rep.append(rep)
        ctx_attn = jnp.stack(ctx_attn, axis=1)             # (B, nK, L)
        ctx_rep = jnp.stack(ctx_rep, axis=1)               # (B, nK, h1)
        fa = ctx_rep @ filter_w[a, 0]                      # (B, nK)
        reps.append(jnp.sum(ctx_rep * fa[:, :, None], axis=1))
        attns.append(jnp.sum(ctx_attn * fa[:, :, None], axis=1))
    return jnp.stack(attns, axis=1), jnp.stack(reps, axis=1)


if __name__ == "__main__":
    # synthetic args (small, consistent with the module's forward)
    num_aspects = 4
    kernel_list = [1, 3, 5]
    h1 = 8
    word_embed_dim = 32
    max_doc_len = 16
    bsz = 2

    key = jax.random.PRNGKey(0)
    keys = jax.random.split(key, 3 + len(kernel_list))
    k_doc, k_proj, k_filt = keys[0], keys[1], keys[2]
    k_asp = keys[3:]

    doc = jax.random.normal(k_doc, (bsz, max_doc_len, word_embed_dim), jnp.float32)
    # parameters, deterministically initialized uniform(-0.01, 0.01) like the module
    asp_proj = jax.random.uniform(
        k_proj, (num_aspects, word_embed_dim, h1), jnp.float32, -0.01, 0.01)
    filter_w = jax.random.uniform(
        k_filt, (num_aspects, 1, h1), jnp.float32, -0.01, 0.01)
    asp_embed_ws = [
        jax.random.uniform(k_asp[i], (num_aspects, c, h1), jnp.float32, -0.01, 0.01)
        for i, c in enumerate(kernel_list)
    ]

    attn, rep = msanr_arl_forward(doc, asp_proj, asp_embed_ws, filter_w,
                                  kernel_list, h1)
    attn = jax.block_until_ready(attn)
    rep = jax.block_until_ready(rep)

    ref_attn, ref_rep = reference(doc, asp_proj, asp_embed_ws, filter_w,
                                  kernel_list, h1)

    assert attn.shape == (bsz, num_aspects, max_doc_len)
    assert rep.shape == (bsz, num_aspects, h1)
    assert jnp.allclose(attn, ref_attn, atol=1e-5, rtol=1e-4)
    assert jnp.allclose(rep, ref_rep, atol=1e-5, rtol=1e-4)

    print("KERNEL_OK")
</pallas_src>

<mosaic_0001>
module attributes {stable_mosaic.version = 11 : i64} {
  func.func @_msanr_arl_kernel(%arg0: i32, %arg1: memref<2x16x32xf32, #tpu.memory_space<vmem>>, %arg2: memref<32x32xf32, #tpu.memory_space<vmem>>, %arg3: memref<32x40xf32, #tpu.memory_space<vmem>>, %arg4: memref<4x32xf32, #tpu.memory_space<vmem>>, %arg5: memref<2x4x16xf32, #tpu.memory_space<vmem>>, %arg6: memref<2x32xf32, #tpu.memory_space<vmem>>) attributes {dimension_semantics = [#tpu.dimension_semantics<parallel>], iteration_bounds = array<i64: 1>, scalar_prefetch = 0 : i64, scratch_operands = 0 : i64, tpu.core_type = #tpu.core_type<tc>, window_params = [{transform_indices = @transform_0, window_bounds = array<i64: 2, 16, 32>}, {pipeline_mode = #tpu.pipeline_mode<synchronous>, transform_indices = @transform_1, window_bounds = array<i64: 32, 32>}, {pipeline_mode = #tpu.pipeline_mode<synchronous>, transform_indices = @transform_2, window_bounds = array<i64: 32, 40>}, {pipeline_mode = #tpu.pipeline_mode<synchronous>, transform_indices = @transform_3, window_bounds = array<i64: 4, 32>}, {transform_indices = @transform_4, window_bounds = array<i64: 2, 4, 16>}, {transform_indices = @transform_5, window_bounds = array<i64: 2, 32>}]} {
    %c0 = arith.constant 0 : index
    %c0_0 = arith.constant 0 : index
    %c0_1 = arith.constant 0 : index
    %0 = vector.load %arg1[%c0, %c0_0, %c0_1] : memref<2x16x32xf32, #tpu.memory_space<vmem>>, vector<2x16x32xf32>
    %1 = vector.shape_cast %0 : vector<2x16x32xf32> to vector<32x32xf32>
    %c0_2 = arith.constant 0 : index
    %c0_3 = arith.constant 0 : index
    %2 = vector.load %arg2[%c0_2, %c0_3] : memref<32x32xf32, #tpu.memory_space<vmem>>, vector<32x32xf32>
    %cst = arith.constant dense<0.000000e+00> : vector<32x32xf32>
    %3 = tpu.matmul %1, %2, %cst {dimension_numbers = #tpu.dot_dimension_numbers<[1], [0], [0], [1], [0, 0, 1, 1], [], []>} : vector<32x32xf32>, vector<32x32xf32>, vector<32x32xf32> -> vector<32x32xf32>
    %c0_4 = arith.constant 0 : index
    %c0_5 = arith.constant 0 : index
    %4 = vector.load %arg3[%c0_4, %c0_5] : memref<32x40xf32, #tpu.memory_space<vmem>>, vector<32x40xf32>
    %cst_6 = arith.constant dense<0.000000e+00> : vector<32x40xf32>
    %5 = tpu.matmul %3, %4, %cst_6 {dimension_numbers = #tpu.dot_dimension_numbers<[1], [0], [0], [1], [0, 0, 1, 1], [], []>} : vector<32x32xf32>, vector<32x40xf32>, vector<32x40xf32> -> vector<32x40xf32>
    %6 = vector.shape_cast %3 : vector<32x32xf32> to vector<2x16x32xf32>
    %7 = vector.shape_cast %5 : vector<32x40xf32> to vector<2x16x40xf32>
    %8 = vector.extract_strided_slice %7 {offsets = [0, 0, 36], sizes = [2, 16, 4], strides = [1, 1, 1]} : vector<2x16x40xf32> to vector<2x16x4xf32>
    %cst_7 = arith.constant 0.000000e+00 : f32
    %9 = vector.broadcast %cst_7 : f32 to vector<2x16x4xf32>
    %cst_8 = arith.constant 0.000000e+00 : f32
    %10 = vector.broadcast %cst_8 : f32 to vector<2x16x4xf32>
    %11 = vector.extract_strided_slice %7 {offsets = [0, 0, 0], sizes = [2, 16, 4], strides = [1, 1, 1]} : vector<2x16x40xf32> to vector<2x16x4xf32>
    %12 = arith.addf %10, %11 : vector<2x16x4xf32>
    %cst_9 = arith.constant dense<0xFF800000> : vector<2x4xf32>
    %13 = vector.multi_reduction <maximumf>, %12, %cst_9 [1] : vector<2x16x4xf32> to vector<2x4xf32>
    %14 = vector.shape_cast %13 : vector<2x4xf32> to vector<2x1x4xf32>
    %15 = vector.broadcast %14 : vector<2x1x4xf32> to vector<2x16x4xf32>
    %16 = arith.subf %12, %15 : vector<2x16x4xf32>
    %17 = math.exp %16 : vector<2x16x4xf32>
    %cst_10 = arith.constant dense<0.000000e+00> : vector<2x4xf32>
    %18 = vector.multi_reduction <add>, %17, %cst_10 [1] : vector<2x16x4xf32> to vector<2x4xf32>
    %19 = vector.shape_cast %18 : vector<2x4xf32> to vector<2x1x4xf32>
    %20 = tpu.reciprocal %19 {approx = true} : vector<2x1x4xf32> -> vector<2x1x4xf32>
    %21 = vector.broadcast %20 : vector<2x1x4xf32> to vector<2x16x4xf32>
    %22 = arith.mulf %17, %21 : vector<2x16x4xf32>
    %23 = arith.mulf %22, %8 : vector<2x16x4xf32>
    %cst_11 = arith.constant dense<0.000000e+00> : vector<2x4xf32>
    %24 = vector.multi_reduction <add>, %23, %cst_11 [1] : vector<2x16x4xf32> to vector<2x4xf32>
    %25 = vector.shape_cast %24 : vector<2x4xf32> to vector<2x1x4xf32>
    %26 = vector.broadcast %25 : vector<2x1x4xf32> to vector<2x16x4xf32>
    %27 = arith.mulf %22, %26 : vector<2x16x4xf32>
    %28 = arith.addf %9, %27 : vector<2x16x4xf32>
    %cst_12 = arith.constant 0.000000e+00 : f32
    %29 = vector.broadcast %cst_12 : f32 to vector<2x16x4xf32>
    %30 = vector.extract_strided_slice %7 {offsets = [0, 0, 4], sizes = [2, 16, 4], strides = [1, 1, 1]} : vector<2x16x40xf32> to vector<2x16x4xf32>
    %cst_13 = arith.constant 0.000000e+00 : f32
    %31 = vector.broadcast %cst_13 : f32 to vector<2x1x4xf32>
    %32 = vector.extract_strided_slice %30 {offsets = [0, 0, 0], sizes = [2, 15, 4], strides = [1, 1, 1]} : vector<2x16x4xf32> to vector<2x15x4xf32>
    %33 = tpu.concatenate %31, %32 in 1 : vector<2x1x4xf32>, vector<2x15x4xf32> -> vector<2x16x4xf32>
    %34 = arith.addf %29, %33 : vector<2x16x4xf32>
    %35 = vector.extract_strided_slice %7 {offsets = [0, 0, 8], sizes = [2, 16, 4], strides = [1, 1, 1]} : vector<2x16x40xf32> to vector<2x16x4xf32>
    %36 = arith.addf %34, %35 : vector<2x16x4xf32>
    %37 = vector.extract_strided_slice %7 {offsets = [0, 0, 12], sizes = [2, 16, 4], strides = [1, 1, 1]} : vector<2x16x40xf32> to vector<2x16x4xf32>
    %cst_14 = arith.constant 0.000000e+00 : f32
    %38 = vector.broadcast %cst_14 : f32 to vector<2x1x4xf32>
    %39 = vector.extract_strided_slice %37 {offsets = [0, 1, 0], sizes = [2, 15, 4], strides = [1, 1, 1]} : vector<2x16x4xf32> to vector<2x15x4xf32>
    %40 = tpu.concatenate %39, %38 in 1 : vector<2x15x4xf32>, vector<2x1x4xf32> -> vector<2x16x4xf32>
    %41 = arith.addf %36, %40 : vector<2x16x4xf32>
    %cst_15 = arith.constant dense<0xFF800000> : vector<2x4xf32>
    %42 = vector.multi_reduction <maximumf>, %41, %cst_15 [1] : vector<2x16x4xf32> to vector<2x4xf32>
    %43 = vector.shape_cast %42 : vector<2x4xf32> to vector<2x1x4xf32>
    %44 = vector.broadcast %43 : vector<2x1x4xf32> to vector<2x16x4xf32>
    %45 = arith.subf %41, %44 : vector<2x16x4xf32>
    %46 = math.exp %45 : vector<2x16x4xf32>
    %cst_16 = arith.constant dense<0.000000e+00> : vector<2x4xf32>
    %47 = vector.multi_reduction <add>, %46, %cst_16 [1] : vector<2x16x4xf32> to vector<2x4xf32>
    %48 = vector.shape_cast %47 : vector<2x4xf32> to vector<2x1x4xf32>
    %49 = tpu.reciprocal %48 {approx = true} : vector<2x1x4xf32> -> vector<2x1x4xf32>
    %50 = vector.broadcast %49 : vector<2x1x4xf32> to vector<2x16x4xf32>
    %51 = arith.mulf %46, %50 : vector<2x16x4xf32>
    %52 = arith.mulf %51, %8 : vector<2x16x4xf32>
    %cst_17 = arith.constant dense<0.000000e+00> : vector<2x4xf32>
    %53 = vector.multi_reduction <add>, %52, %cst_17 [1] : vector<2x16x4xf32> to vector<2x4xf32>
    %54 = vector.shape_cast %53 : vector<2x4xf32> to vector<2x1x4xf32>
    %55 = vector.broadcast %54 : vector<2x1x4xf32> to vector<2x16x4xf32>
    %56 = arith.mulf %51, %55 : vector<2x16x4xf32>
    %57 = arith.addf %28, %56 : vector<2x16x4xf32>
    %cst_18 = arith.constant 0.000000e+00 : f32
    %58 = vector.broadcast %cst_18 : f32 to vector<2x16x4xf32>
    %59 = vector.extract_strided_slice %7 {offsets = [0, 0, 16], sizes = [2, 16, 4], strides = [1, 1, 1]} : vector<2x16x40xf32> to vector<2x16x4xf32>
    %cst_19 = arith.constant 0.000000e+00 : f32
    %60 = vector.broadcast %cst_19 : f32 to vector<2x2x4xf32>
    %61 = vector.extract_strided_slice %59 {offsets = [0, 0, 0], sizes = [2, 14, 4], strides = [1, 1, 1]} : vector<2x16x4xf32> to vector<2x14x4xf32>
    %62 = tpu.concatenate %60, %61 in 1 : vector<2x2x4xf32>, vector<2x14x4xf32> -> vector<2x16x4xf32>
    %63 = arith.addf %58, %62 : vector<2x16x4xf32>
    %64 = vector.extract_strided_slice %7 {offsets = [0, 0, 20], sizes = [2, 16, 4], strides = [1, 1, 1]} : vector<2x16x40xf32> to vector<2x16x4xf32>
    %cst_20 = arith.constant 0.000000e+00 : f32
    %65 = vector.broadcast %cst_20 : f32 to vector<2x1x4xf32>
    %66 = vector.extract_strided_slice %64 {offsets = [0, 0, 0], sizes = [2, 15, 4], strides = [1, 1, 1]} : vector<2x16x4xf32> to vector<2x15x4xf32>
    %67 = tpu.concatenate %65, %66 in 1 : vector<2x1x4xf32>, vector<2x15x4xf32> -> vector<2x16x4xf32>
    %68 = arith.addf %63, %67 : vector<2x16x4xf32>
    %69 = vector.extract_strided_slice %7 {offsets = [0, 0, 24], sizes = [2, 16, 4], strides = [1, 1, 1]} : vector<2x16x40xf32> to vector<2x16x4xf32>
    %70 = arith.addf %68, %69 : vector<2x16x4xf32>
    %71 = vector.extract_strided_slice %7 {offsets = [0, 0, 28], sizes = [2, 16, 4], strides = [1, 1, 1]} : vector<2x16x40xf32> to vector<2x16x4xf32>
    %cst_21 = arith.constant 0.000000e+00 : f32
    %72 = vector.broadcast %cst_21 : f32 to vector<2x1x4xf32>
    %73 = vector.extract_strided_slice %71 {offsets = [0, 1, 0], sizes = [2, 15, 4], strides = [1, 1, 1]} : vector<2x16x4xf32> to vector<2x15x4xf32>
    %74 = tpu.concatenate %73, %72 in 1 : vector<2x15x4xf32>, vector<2x1x4xf32> -> vector<2x16x4xf32>
    %75 = arith.addf %70, %74 : vector<2x16x4xf32>
    %76 = vector.extract_strided_slice %7 {offsets = [0, 0, 32], sizes = [2, 16, 4], strides = [1, 1, 1]} : vector<2x16x40xf32> to vector<2x16x4xf32>
    %cst_22 = arith.constant 0.000000e+00 : f32
    %77 = vector.broadcast %cst_22 : f32 to vector<2x2x4xf32>
    %78 = vector.extract_strided_slice %76 {offsets = [0, 2, 0], sizes = [2, 14, 4], strides = [1, 1, 1]} : vector<2x16x4xf32> to vector<2x14x4xf32>
    %79 = tpu.concatenate %78, %77 in 1 : vector<2x14x4xf32>, vector<2x2x4xf32> -> vector<2x16x4xf32>
    %80 = arith.addf %75, %79 : vector<2x16x4xf32>
    %cst_23 = arith.constant dense<0xFF800000> : vector<2x4xf32>
    %81 = vector.multi_reduction <maximumf>, %80, %cst_23 [1] : vector<2x16x4xf32> to vector<2x4xf32>
    %82 = vector.shape_cast %81 : vector<2x4xf32> to vector<2x1x4xf32>
    %83 = vector.broadcast %82 : vector<2x1x4xf32> to vector<2x16x4xf32>
    %84 = arith.subf %80, %83 : vector<2x16x4xf32>
    %85 = math.exp %84 : vector<2x16x4xf32>
    %cst_24 = arith.constant dense<0.000000e+00> : vector<2x4xf32>
    %86 = vector.multi_reduction <add>, %85, %cst_24 [1] : vector<2x16x4xf32> to vector<2x4xf32>
    %87 = vector.shape_cast %86 : vector<2x4xf32> to vector<2x1x4xf32>
    %88 = tpu.reciprocal %87 {approx = true} : vector<2x1x4xf32> -> vector<2x1x4xf32>
    %89 = vector.broadcast %88 : vector<2x1x4xf32> to vector<2x16x4xf32>
    %90 = arith.mulf %85, %89 : vector<2x16x4xf32>
    %91 = arith.mulf %90, %8 : vector<2x16x4xf32>
    %cst_25 = arith.constant dense<0.000000e+00> : vector<2x4xf32>
    %92 = vector.multi_reduction <add>, %91, %cst_25 [1] : vector<2x16x4xf32> to vector<2x4xf32>
    %93 = vector.shape_cast %92 : vector<2x4xf32> to vector<2x1x4xf32>
    %94 = vector.broadcast %93 : vector<2x1x4xf32> to vector<2x16x4xf32>
    %95 = arith.mulf %90, %94 : vector<2x16x4xf32>
    %96 = arith.addf %57, %95 : vector<2x16x4xf32>
    %97 = tpu.transpose %96, [0, 2, 1] : vector<2x16x4xf32> -> vector<2x4x16xf32>
    %c0_26 = arith.constant 0 : index
    %c0_27 = arith.constant 0 : index
    %c0_28 = arith.constant 0 : index
    %98 = vector.load %arg5[%c0_26, %c0_27, %c0_28] : memref<2x4x16xf32, #tpu.memory_space<vmem>>, vector<2x4x16xf32>
    tpu.vector_store %arg5[%c0_26, %c0_27, %c0_28], %97 {strides = array<i32>} : memref<2x4x16xf32, #tpu.memory_space<vmem>>, vector<2x4x16xf32>,
    %99 = vector.shape_cast %96 : vector<2x16x4xf32> to vector<32x4xf32>
    %c0_29 = arith.constant 0 : index
    %c0_30 = arith.constant 0 : index
    %100 = vector.load %arg4[%c0_29, %c0_30] : memref<4x32xf32, #tpu.memory_space<vmem>>, vector<4x32xf32>
    %cst_31 = arith.constant dense<0.000000e+00> : vector<32x32xf32>
    %101 = tpu.matmul %99, %100, %cst_31 {dimension_numbers = #tpu.dot_dimension_numbers<[1], [0], [0], [1], [0, 0, 1, 1], [], []>} : vector<32x4xf32>, vector<4x32xf32>, vector<32x32xf32> -> vector<32x32xf32>
    %102 = vector.shape_cast %101 : vector<32x32xf32> to vector<2x16x32xf32>
    %103 = arith.mulf %102, %6 : vector<2x16x32xf32>
    %cst_32 = arith.constant dense<0.000000e+00> : vector<2x32xf32>
    %104 = vector.multi_reduction <add>, %103, %cst_32 [1] : vector<2x16x32xf32> to vector<2x32xf32>
    %c0_33 = arith.constant 0 : index
    %c0_34 = arith.constant 0 : index
    %105 = vector.load %arg6[%c0_33, %c0_34] : memref<2x32xf32, #tpu.memory_space<vmem>>, vector<2x32xf32>
    tpu.vector_store %arg6[%c0_33, %c0_34], %104 {strides = array<i32>} : memref<2x32xf32, #tpu.memory_space<vmem>>, vector<2x32xf32>,
    return
  }
  func.func @transform_0(%arg0: i32) -> (i32, i32, i32) {
    %c0_i32 = arith.constant 0 : i32
    %c0_i32_0 = arith.constant 0 : i32
    %c0_i32_1 = arith.constant 0 : i32
    return %arg0, %c0_i32, %c0_i32_0 : i32, i32, i32
  }
  func.func @transform_1(%arg0: i32) -> (i32, i32) {
    %c0_i32 = arith.constant 0 : i32
    %c0_i32_0 = arith.constant 0 : i32
    %c0_i32_1 = arith.constant 0 : i32
    return %c0_i32, %c0_i32_0 : i32, i32
  }
  func.func @transform_2(%arg0: i32) -> (i32, i32) {
    %c0_i32 = arith.constant 0 : i32
    %c0_i32_0 = arith.constant 0 : i32
    %c0_i32_1 = arith.constant 0 : i32
    return %c0_i32, %c0_i32_0 : i32, i32
  }
  func.func @transform_3(%arg0: i32) -> (i32, i32) {
    %c0_i32 = arith.constant 0 : i32
    %c0_i32_0 = arith.constant 0 : i32
    %c0_i32_1 = arith.constant 0 : i32
    return %c0_i32, %c0_i32_0 : i32, i32
  }
  func.func @transform_4(%arg0: i32) -> (i32, i32, i32) {
    %c0_i32 = arith.constant 0 : i32
    %c0_i32_0 = arith.constant 0 : i32
    %c0_i32_1 = arith.constant 0 : i32
    return %arg0, %c0_i32, %c0_i32_0 : i32, i32, i32
  }
  func.func @transform_5(%arg0: i32) -> (i32, i32) {
    %c0_i32 = arith.constant 0 : i32
    %c0_i32_0 = arith.constant 0 : i32
    return %arg0, %c0_i32 : i32, i32
  }
}

</mosaic_0001>

<llo_original>
// kernel: tpu_custom_call.1
$region0: #{tpu_custom_call.1}
  #allocation0 [shape = 'u32[]', space=smem, size = 0x4, offset = 0x4, fixed_abs, tag = 'smem constant byte address 0x4 - core index']
  #allocation1 [shape = 'u32[144,128]{1,0:T(1,128)}', space=vmem, size = 0x12000, scoped, tag = 'internal scratch']
  %s0 = inlined_call_operand.hbm [shape: f32[2,16,32], index: 0, kind: input, shape index: {}]
  %s1 = inlined_call_operand.hbm [shape: f32[32,32], index: 1, kind: input, shape index: {}]
  %s2 = inlined_call_operand.hbm [shape: f32[32,40], index: 2, kind: input, shape index: {}]
  %s3 = inlined_call_operand.vmem [shape: f32[4,32], index: 3, kind: input, shape index: {}]
  %s4 = inlined_call_operand.hbm [shape: f32[2,4,16], index: 4, kind: output, shape index: {0}]
  %s5 = inlined_call_operand.hbm [shape: f32[2,32], index: 5, kind: output, shape index: {1}]
  %6 = xla_tuple %s4, %s5
  %s7 = sld [smem:[#allocation0]]
  $region46: #{tpu_custom_call.1} parent=0
    _
  %s9 = ssub.s32 1, %s7
  %s10 = scalar_select 0, %s9, %s7
  $region1: #{tpu_custom_call.1} parent=0
    #allocation2 [shape = 'u8[16384]{0}', space=vmem, size = 0x4000, scoped, tag = 'input window, operand 0, single buffered']
    #allocation3 [shape = 's32[1]{0}', space=sflag, size = 0x4, scoped, tag = 'scoped memory for tpu_custom_call.1']
    #allocation4 [shape = 's32[1]{0}', space=sflag, size = 0x4, scoped, tag = 'scoped memory for tpu_custom_call.1']
    #allocation5 [shape = 'u8[16384]{0}', space=vmem, size = 0x4000, scoped, tag = 'input window, operand 1, single buffered']
    #allocation6 [shape = 's32[1]{0}', space=sflag, size = 0x4, scoped, tag = 'scoped memory for tpu_custom_call.1']
    #allocation7 [shape = 'u8[16384]{0}', space=vmem, size = 0x4000, scoped, tag = 'input window, operand 2, single buffered']
    #allocation8 [shape = 'u8[4096]{0}', space=vmem, size = 0x1000, scoped, tag = 'output window, operand 0, single buffered']
    #allocation9 [shape = 'u8[1024]{0}', space=vmem, size = 0x400, scoped, tag = 'output window, operand 1, single buffered']
    #allocation10 [shape = 's32[1]{0}', space=sflag, size = 0x4, scoped, tag = 'scoped memory for tpu_custom_call.1']
    %11 = vsyncpa [#allocation3], 0
    %12 = vsyncpa [#allocation6], 0
    %13 = vsyncpa [#allocation4], 0
    %14 = vsyncpa [#allocation10], 0
    // Predicated region
    $region2: #{tpu_custom_call.1} parent=1 // pred_check
      _
    $region3: #{tpu_custom_call.1} parent=1 // pred_check_branch
      %16 = sbr.rel (0) target = $region5
    $region4: #{tpu_custom_call.1} parent=1 // pred_region
      %s18 = ssub.s32 512, 512
      %19 = vsyncadd [#allocation3], %s18
      %s20 = sshll.u32 [#allocation2], 4
      %s21 = int_to_ptr.vmem [resolvable:$true] %s20
      %26 = dma.hbm_to_vmem [thread:$0]  %s0, 512, %s21, [#allocation3], 128, 128, 8
    $region5: #{tpu_custom_call.1} parent=1 // pred_fallthru
      _
    // Predicated region
    $region6: #{tpu_custom_call.1} parent=1 // pred_check
      _
    $region7: #{tpu_custom_call.1} parent=1 // pred_check_branch
      %28 = sbr.rel (0) target = $region9
    $region8: #{tpu_custom_call.1} parent=1 // pred_region
      %s30 = ssub.s32 512, 512
      %31 = vsyncadd [#allocation6], %s30
      %s32 = sshll.u32 [#allocation5], 4
      %s33 = int_to_ptr.vmem [resolvable:$true] %s32
      %38 = dma.hbm_to_vmem [thread:$0]  %s1, 512, %s33, [#allocation6], 128, 128, 8
    $region9: #{tpu_custom_call.1} parent=1 // pred_fallthru
      _
    // Predicated region
    $region10: #{tpu_custom_call.1} parent=1 // pred_check
      _
    $region11: #{tpu_custom_call.1} parent=1 // pred_check_branch
      %40 = sbr.rel (0) target = $region13
    $region12: #{tpu_custom_call.1} parent=1 // pred_region
      %s42 = ssub.s32 512, 512
      %43 = vsyncadd [#allocation6], %s42
      %s44 = sshll.u32 [#allocation7], 4
      %s45 = int_to_ptr.vmem [resolvable:$true] %s44
      %50 = dma.hbm_to_vmem [thread:$0]  %s2, 512, %s45, [#allocation6], 128, 128, 8
    $region13: #{tpu_custom_call.1} parent=1 // pred_fallthru
      _
    // Predicated region
    $region14: #{tpu_custom_call.1} parent=1 // pred_check
      _
    $region15: #{tpu_custom_call.1} parent=1 // pred_check_branch
      %52 = sbr.rel (0) target = $region17
    $region16: #{tpu_custom_call.1} parent=1 // pred_region
      _
    $region17: #{tpu_custom_call.1} parent=1 // pred_fallthru
      _
    // Predicated region
    $region18: #{tpu_custom_call.1} parent=1 // pred_check
      _
    $region19: #{tpu_custom_call.1} parent=1 // pred_check_branch
      %54 = sbr.rel (0) target = $region21
    $region20: #{tpu_custom_call.1} parent=1 // pred_region
      %55 = dma.done [#allocation3], 512
    $region21: #{tpu_custom_call.1} parent=1 // pred_fallthru
      _
    // Predicated region
    $region22: #{tpu_custom_call.1} parent=1 // pred_check
      _
    $region23: #{tpu_custom_call.1} parent=1 // pred_check_branch
      %57 = sbr.rel (0) target = $region25
    $region24: #{tpu_custom_call.1} parent=1 // pred_region
      %58 = dma.done [#allocation6], 512
    $region25: #{tpu_custom_call.1} parent=1 // pred_fallthru
      _
    // Predicated region
    $region26: #{tpu_custom_call.1} parent=1 // pred_check
      _
    $region27: #{tpu_custom_call.1} parent=1 // pred_check_branch
      %60 = sbr.rel (0) target = $region29
    $region28: #{tpu_custom_call.1} parent=1 // pred_region
      %61 = dma.done [#allocation6], 512
    $region29: #{tpu_custom_call.1} parent=1 // pred_fallthru
      _
    %v62 = vld [vmem:[#allocation2] sm:$0xff]
    %v63 = vld [vmem:[#allocation2 + $0x8] sm:$0xff]
    %v64 = vld [vmem:[#allocation2 + $0x10] sm:$0xff]
    %v65 = vld [vmem:[#allocation2 + $0x18] sm:$0xff]
    %v66 = vld [vmem:[#allocation5] sm:$0xff]
    %v67 = vld [vmem:[#allocation5 + $0x8] sm:$0xff]
    %v68 = vld [vmem:[#allocation5 + $0x10] sm:$0xff]
    %v69 = vld [vmem:[#allocation5 + $0x18] sm:$0xff]
    %vm70 = vcmask 261120
    %v72 = vsel %vm70, %v62, 0
    %v75 = vsel %vm70, %v63, 0
    %v78 = vsel %vm70, %v64, 0
    %v81 = vsel %vm70, %v65, 0
    %83 = vmatprep.subr.mxu0 0.0
    %84 = vmatpush1.msra.mxu0 0.0
    %85 = vmatprep.subr.mxu0 0.0
    %86 = vmatpush1.msra.mxu0 0.0
    %87 = vmatprep.subr.mxu0 0.0
    %88 = vmatpush1.msra.mxu0 0.0
    %89 = vmatprep.subr.mxu0 0.0
    %90 = vmatpush1.msra.mxu0 0.0
    %91 = vmatprep.subr.mxu0 0.0
    %92 = vmatpush1.msra.mxu0 0.0
    %93 = vmatprep.subr.mxu0 0.0
    %94 = vmatpush1.msra.mxu0 0.0
    %95 = vmatprep.subr.mxu0 0.0
    %96 = vmatpush1.msra.mxu0 0.0
    %97 = vmatprep.subr.mxu0 0.0
    %98 = vmatpush1.msra.mxu0 0.0
    %99 = vmatprep.subr.mxu0 0.0
    %100 = vmatpush1.msra.mxu0 0.0
    %101 = vmatprep.subr.mxu0 0.0
    %102 = vmatpush1.msra.mxu0 0.0
    %103 = vmatprep.subr.mxu0 0.0
    %104 = vmatpush1.msra.mxu0 0.0
    %105 = vmatprep.subr.mxu0 0.0
    %106 = vmatpush1.msra.mxu0 0.0
    %107 = vmatprep.subr.mxu0 0.0
    %108 = vmatpush1.msra.mxu0 %v69
    %109 = vmatprep.subr.mxu0 0.0
    %110 = vmatpush1.msra.mxu0 %v68
    %111 = vmatprep.subr.mxu0 0.0
    %112 = vmatpush1.msra.mxu0 %v67
    %113 = vmatprep.subr.mxu0 0.0
    %114 = vmatpush1.msra.mxu0 %v66
    %115 = vmatprep.subr.mxu0 0.0
    %116 = vmatpush2.msra.mxu0 0.0
    %117 = vmatprep.subr.mxu0 0.0
    %118 = vmatpush2.msra.mxu0 0.0
    %119 = vmatprep.subr.mxu0 0.0
    %120 = vmatpush2.msra.mxu0 0.0
    %121 = vmatprep.subr.mxu0 0.0
    %122 = vmatpush2.msra.mxu0 0.0
    %123 = vmatprep.subr.mxu0 0.0
    %124 = vmatpush2.msra.mxu0 0.0
    %125 = vmatprep.subr.mxu0 0.0
    %126 = vmatpush2.msra.mxu0 0.0
    %127 = vmatprep.subr.mxu0 0.0
    %128 = vmatpush2.msra.mxu0 0.0
    %129 = vmatprep.subr.mxu0 0.0
    %130 = vmatpush2.msra.mxu0 0.0
    %131 = vmatprep.subr.mxu0 0.0
    %132 = vmatpush2.msra.mxu0 0.0
    %133 = vmatprep.subr.mxu0 0.0
    %134 = vmatpush2.msra.mxu0 0.0
    %135 = vmatprep.subr.mxu0 0.0
    %136 = vmatpush2.msra.mxu0 0.0
    %137 = vmatprep.subr.mxu0 0.0
    %138 = vmatpush2.msra.mxu0 0.0
    %139 = vmatprep.subr.mxu0 0.0
    %140 = vmatpush2.msra.mxu0 0.0
    %141 = vmatprep.subr.mxu0 0.0
    %142 = vmatpush2.msra.mxu0 0.0
    %143 = vmatprep.subr.mxu0 0.0
    %144 = vmatpush2.msra.mxu0 0.0
    %145 = vmatprep.subr.mxu0 0.0
    %146 = vmatpush2.msra.mxu0 0.0
    %147 = vmatprep.mubr.f32.mxu0 0.0
    %148 = vmatmul.mubr.f32.gmra.mxu0 %v72
    %v149 = vpop.f32.mrf.mxu0
    %v150 = vadd.f32 0.0, %v149
    %v151 = vpop.f32.mrf.mxu0
    %152 = vmatprep.mubr.f32.mxu0 0.0
    %153 = vmatmul.mubr.f32.gmra.mxu0 %v75
    %v154 = vpop.f32.mrf.mxu0
    %v155 = vadd.f32 0.0, %v154
    %v156 = vpop.f32.mrf.mxu0
    %157 = vmatprep.mubr.f32.mxu0 0.0
    %158 = vmatmul.mubr.f32.gmra.mxu0 %v78
    %v159 = vpop.f32.mrf.mxu0
    %v160 = vadd.f32 0.0, %v159
    %v161 = vpop.f32.mrf.mxu0
    %162 = vmatprep.mubr.f32.mxu0 0.0
    %163 = vmatmul.mubr.f32.gmra.mxu0 %v81
    %v164 = vpop.f32.mrf.mxu0
    %v165 = vadd.f32 0.0, %v164
    %v166 = vpop.f32.mrf.mxu0
    %167 = vdwg.mxu0
    %v168 = vld [vmem:[#allocation7] sm:$0xff]
    %v169 = vld [vmem:[#allocation7 + $0x8] sm:$0xff]
    %v170 = vld [vmem:[#allocation7 + $0x10] sm:$0xff]
    %v171 = vld [vmem:[#allocation7 + $0x18] sm:$0xff]
    %v173 = vsel %vm70, %v150, 0
    %v176 = vsel %vm70, %v155, 0
    %v179 = vsel %vm70, %v160, 0
    %v182 = vsel %vm70, %v165, 0
    %184 = vmatprep.subr.mxu0 0.0
    %185 = vmatpush1.msra.mxu0 0.0
    %186 = vmatprep.subr.mxu0 0.0
    %187 = vmatpush1.msra.mxu0 0.0
    %188 = vmatprep.subr.mxu0 0.0
    %189 = vmatpush1.msra.mxu0 0.0
    %190 = vmatprep.subr.mxu0 0.0
    %191 = vmatpush1.msra.mxu0 0.0
    %192 = vmatprep.subr.mxu0 0.0
    %193 = vmatpush1.msra.mxu0 0.0
    %194 = vmatprep.subr.mxu0 0.0
    %195 = vmatpush1.msra.mxu0 0.0
    %196 = vmatprep.subr.mxu0 0.0
    %197 = vmatpush1.msra.mxu0 0.0
    %198 = vmatprep.subr.mxu0 0.0
    %199 = vmatpush1.msra.mxu0 0.0
    %200 = vmatprep.subr.mxu0 0.0
    %201 = vmatpush1.msra.mxu0 0.0
    %202 = vmatprep.subr.mxu0 0.0
    %203 = vmatpush1.msra.mxu0 0.0
    %204 = vmatprep.subr.mxu0 0.0
    %205 = vmatpush1.msra.mxu0 0.0
    %206 = vmatprep.subr.mxu0 0.0
    %207 = vmatpush1.msra.mxu0 0.0
    %208 = vmatprep.subr.mxu0 0.0
    %209 = vmatpush1.msra.mxu0 %v171
    %210 = vmatprep.subr.mxu0 0.0
    %211 = vmatpush1.msra.mxu0 %v170
    %212 = vmatprep.subr.mxu0 0.0
    %213 = vmatpush1.msra.mxu0 %v169
    %214 = vmatprep.subr.mxu0 0.0
    %215 = vmatpush1.msra.mxu0 %v168
    %216 = vmatprep.subr.mxu0 0.0
    %217 = vmatpush2.msra.mxu0 0.0
    %218 = vmatprep.subr.mxu0 0.0
    %219 = vmatpush2.msra.mxu0 0.0
    %220 = vmatprep.subr.mxu0 0.0
    %221 = vmatpush2.msra.mxu0 0.0
    %222 = vmatprep.subr.mxu0 0.0
    %223 = vmatpush2.msra.mxu0 0.0
    %224 = vmatprep.subr.mxu0 0.0
    %225 = vmatpush2.msra.mxu0 0.0
    %226 = vmatprep.subr.mxu0 0.0
    %227 = vmatpush2.msra.mxu0 0.0
    %228 = vmatprep.subr.mxu0 0.0
    %229 = vmatpush2.msra.mxu0 0.0
    %230 = vmatprep.subr.mxu0 0.0
    %231 = vmatpush2.msra.mxu0 0.0
    %232 = vmatprep.subr.mxu0 0.0
    %233 = vmatpush2.msra.mxu0 0.0
    %234 = vmatprep.subr.mxu0 0.0
    %235 = vmatpush2.msra.mxu0 0.0
    %236 = vmatprep.subr.mxu0 0.0
    %237 = vmatpush2.msra.mxu0 0.0
    %238 = vmatprep.subr.mxu0 0.0
    %239 = vmatpush2.msra.mxu0 0.0
    %240 = vmatprep.subr.mxu0 0.0
    %241 = vmatpush2.msra.mxu0 0.0
    %242 = vmatprep.subr.mxu0 0.0
    %243 = vmatpush2.msra.mxu0 0.0
    %244 = vmatprep.subr.mxu0 0.0
    %245 = vmatpush2.msra.mxu0 0.0
    %246 = vmatprep.subr.mxu0 0.0
    %247 = vmatpush2.msra.mxu0 0.0
    %248 = vmatprep.mubr.f32.mxu0 0.0
    %249 = vmatmul.mubr.f32.gmra.mxu0 %v173
    %v250 = vpop.f32.mrf.mxu0
    %v251 = vadd.f32 0.0, %v250
    %v252 = vpop.f32.mrf.mxu0
    %253 = vmatprep.mubr.f32.mxu0 0.0
    %254 = vmatmul.mubr.f32.gmra.mxu0 %v176
    %v255 = vpop.f32.mrf.mxu0
    %v256 = vadd.f32 0.0, %v255
    %v257 = vpop.f32.mrf.mxu0
    %258 = vmatprep.mubr.f32.mxu0 0.0
    %259 = vmatmul.mubr.f32.gmra.mxu0 %v179
    %v260 = vpop.f32.mrf.mxu0
    %v261 = vadd.f32 0.0, %v260
    %v262 = vpop.f32.mrf.mxu0
    %263 = vmatprep.mubr.f32.mxu0 0.0
    %264 = vmatmul.mubr.f32.gmra.mxu0 %v182
    %v265 = vpop.f32.mrf.mxu0
    %v266 = vadd.f32 0.0, %v265
    %v267 = vpop.f32.mrf.mxu0
    %268 = vdwg.mxu0
    %v269 = vadd.f32 %v251, 0.0
    %v270 = vadd.f32 %v256, 0.0
    %v271 = vadd.f32 %v261, 0.0
    %v272 = vadd.f32 %v266, 0.0
    %vm273 = vcmask 31744
    %v274 = vsel %vm273, %v269, -inf
    %v275 = vsel %vm273, %v270, -inf
    %v276 = vmax.f32 %v274, %v275
    %v277 = vrot.slane %v276, 4
    %v278 = vmax.f32 %v276, %v277
    %v279 = vrot.slane %v278, 2
    %v280 = vmax.f32 %v278, %v279
    %v281 = vrot.slane %v280, 1
    %v282 = vmax.f32 %v280, %v281
    %v283 = vsel %vm273, %v271, -inf
    %v284 = vsel %vm273, %v272, -inf
    %v285 = vmax.f32 %v283, %v284
    %v286 = vrot.slane %v285, 4
    %v287 = vmax.f32 %v285, %v286
    %v288 = vrot.slane %v287, 2
    %v289 = vmax.f32 %v287, %v288
    %v290 = vrot.slane %v289, 1
    %v291 = vmax.f32 %v289, %v290
    %v292 = vsub.f32 %v269, %v282
    %v293 = vsub.f32 %v270, %v282
    %v294 = vsub.f32 %v271, %v291
    %v295 = vsub.f32 %v272, %v291
    %v296 = vmul.f32 %v292, 1.442695
    %v297 = vpow.pop %v296
    %v298 = vmul.f32 %v293, 1.442695
    %v299 = vpow.pop %v298
    %v300 = vmul.f32 %v294, 1.442695
    %v301 = vpow.pop %v300
    %v302 = vmul.f32 %v295, 1.442695
    %v303 = vpow.pop %v302
    %v304 = vsel %vm273, %v297, 0.0
    %v305 = vsel %vm273, %v299, 0.0
    %v306 = vadd.f32 %v304, %v305
    %v307 = vrot.slane %v306, 4
    %v308 = vadd.f32 %v306, %v307
    %v309 = vrot.slane %v308, 2
    %v310 = vadd.f32 %v308, %v309
    %v311 = vrot.slane %v310, 1
    %v312 = vadd.f32 %v310, %v311
    %v313 = vsel %vm273, %v301, 0.0
    %v314 = vsel %vm273, %v303, 0.0
    %v315 = vadd.f32 %v313, %v314
    %v316 = vrot.slane %v315, 4
    %v317 = vadd.f32 %v315, %v316
    %v318 = vrot.slane %v317, 2
    %v319 = vadd.f32 %v317, %v318
    %v320 = vrot.slane %v319, 1
    %v321 = vadd.f32 %v319, %v320
    %v322 = vrcp.pop %v312
    %v323 = vrcp.pop %v321
    %v324 = vmul.f32 %v297, %v322
    %v325 = vmul.f32 %v299, %v322
    %v326 = vmul.f32 %v301, %v323
    %v327 = vmul.f32 %v303, %v323
    %332 = vrot.lane.b32.xlu0 %v251, 92
    %v333 = vpop.permute.xlu0 %332
    %334 = vrot.lane.b32.xlu0 %v256, 92
    %v335 = vpop.permute.xlu0 %334
    %336 = vrot.lane.b32.xlu0 %v261, 92
    %v337 = vpop.permute.xlu0 %336
    %338 = vrot.lane.b32.xlu0 %v266, 92
    %v339 = vpop.permute.xlu0 %338
    %v344 = vmul.f32 %v324, %v333
    %v345 = vmul.f32 %v325, %v335
    %v346 = vmul.f32 %v326, %v337
    %v347 = vmul.f32 %v327, %v339
    %v348 = vsel %vm273, %v344, 0.0
    %v349 = vsel %vm273, %v345, 0.0
    %v350 = vadd.f32 %v348, %v349
    %v351 = vrot.slane %v350, 4
    %v352 = vadd.f32 %v350, %v351
    %v353 = vrot.slane %v352, 2
    %v354 = vadd.f32 %v352, %v353
    %v355 = vrot.slane %v354, 1
    %v356 = vadd.f32 %v354, %v355
    %v357 = vsel %vm273, %v346, 0.0
    %v358 = vsel %vm273, %v347, 0.0
    %v359 = vadd.f32 %v357, %v358
    %v360 = vrot.slane %v359, 4
    %v361 = vadd.f32 %v359, %v360
    %v362 = vrot.slane %v361, 2
    %v363 = vadd.f32 %v361, %v362
    %v364 = vrot.slane %v363, 1
    %v365 = vadd.f32 %v363, %v364
    %v366 = vmul.f32 %v324, %v356
    %v367 = vmul.f32 %v325, %v356
    %v368 = vmul.f32 %v326, %v365
    %v369 = vmul.f32 %v327, %v365
    %v370 = vadd.f32 %v366, 0.0
    %v371 = vadd.f32 %v367, 0.0
    %v372 = vadd.f32 %v368, 0.0
    %v373 = vadd.f32 %v369, 0.0
    %vm374 = vcmask 1040384
    %v375 = vrot.slane %v251, 7
    %v376 = vrot.slane %v256, 7
    %v377 = vsel %vm374, %v375, %v376
    %v378 = vrot.slane %v261, 7
    %v379 = vrot.slane %v266, 7
    %v380 = vsel %vm374, %v378, %v379
    %381 = vrot.lane.b32.xlu0 %v375, 124
    %v382 = vpop.permute.xlu0 %381
    %383 = vrot.lane.b32.xlu0 %v377, 124
    %v384 = vpop.permute.xlu0 %383
    %385 = vrot.lane.b32.xlu0 %v378, 124
    %v386 = vpop.permute.xlu0 %385
    %387 = vrot.lane.b32.xlu0 %v380, 124
    %v388 = vpop.permute.xlu0 %387
    %v393 = vsel %vm374, 0.0, %v382
    %v394 = vsel %vm374, 0.0, %v386
    %v395 = vadd.f32 %v393, 0.0
    %v396 = vadd.f32 %v384, 0.0
    %v397 = vadd.f32 %v394, 0.0
    %v398 = vadd.f32 %v388, 0.0
    %399 = vrot.lane.b32.xlu0 %v251, 120
    %v400 = vpop.permute.xlu0 %399
    %401 = vrot.lane.b32.xlu0 %v256, 120
    %v402 = vpop.permute.xlu0 %401
    %403 = vrot.lane.b32.xlu0 %v261, 120
    %v404 = vpop.permute.xlu0 %403
    %405 = vrot.lane.b32.xlu0 %v266, 120
    %v406 = vpop.permute.xlu0 %405
    %v411 = vadd.f32 %v395, %v400
    %v412 = vadd.f32 %v396, %v402
    %v413 = vadd.f32 %v397, %v404
    %v414 = vadd.f32 %v398, %v406
    %vm415 = vcmask 1046528
    %v416 = vrot.slane %v251, 1
    %v417 = vrot.slane %v256, 1
    %v418 = vsel %vm415, %v416, %v417
    %v419 = vrot.slane %v261, 1
    %v420 = vrot.slane %v266, 1
    %v421 = vsel %vm415, %v419, %v420
    %v424 = vsel %vm415, %v417, 0.0
    %v425 = vsel %vm415, %v420, 0.0
    %428 = vrot.lane.b32.xlu0 %v418, 116
    %v429 = vpop.permute.xlu0 %428
    %430 = vrot.lane.b32.xlu0 %v424, 116
    %v431 = vpop.permute.xlu0 %430
    %432 = vrot.lane.b32.xlu0 %v421, 116
    %v433 = vpop.permute.xlu0 %432
    %434 = vrot.lane.b32.xlu0 %v425, 116
    %v435 = vpop.permute.xlu0 %434
    %v440 = vadd.f32 %v411, %v429
    %v441 = vadd.f32 %v412, %v431
    %v442 = vadd.f32 %v413, %v433
    %v443 = vadd.f32 %v414, %v435
    %v444 = vsel %vm273, %v440, -inf
    %v445 = vsel %vm273, %v441, -inf
    %v446 = vmax.f32 %v444, %v445
    %v447 = vrot.slane %v446, 4
    %v448 = vmax.f32 %v446, %v447
    %v449 = vrot.slane %v448, 2
    %v450 = vmax.f32 %v448, %v449
    %v451 = vrot.slane %v450, 1
    %v452 = vmax.f32 %v450, %v451
    %v453 = vsel %vm273, %v442, -inf
    %v454 = vsel %vm273, %v443, -inf
    %v455 = vmax.f32 %v453, %v454
    %v456 = vrot.slane %v455, 4
    %v457 = vmax.f32 %v455, %v456
    %v458 = vrot.slane %v457, 2
    %v459 = vmax.f32 %v457, %v458
    %v460 = vrot.slane %v459, 1
    %v461 = vmax.f32 %v459, %v460
    %v462 = vsub.f32 %v440, %v452
    %v463 = vsub.f32 %v441, %v452
    %v464 = vsub.f32 %v442, %v461
    %v465 = vsub.f32 %v443, %v461
    %v466 = vmul.f32 %v462, 1.442695
    %v467 = vpow.pop %v466
    %v468 = vmul.f32 %v463, 1.442695
    %v469 = vpow.pop %v468
    %v470 = vmul.f32 %v464, 1.442695
    %v471 = vpow.pop %v470
    %v472 = vmul.f32 %v465, 1.442695
    %v473 = vpow.pop %v472
    %v474 = vsel %vm273, %v467, 0.0
    %v475 = vsel %vm273, %v469, 0.0
    %v476 = vadd.f32 %v474, %v475
    %v477 = vrot.slane %v476, 4
    %v478 = vadd.f32 %v476, %v477
    %v479 = vrot.slane %v478, 2
    %v480 = vadd.f32 %v478, %v479
    %v481 = vrot.slane %v480, 1
    %v482 = vadd.f32 %v480, %v481
    %v483 = vsel %vm273, %v471, 0.0
    %v484 = vsel %vm273, %v473, 0.0
    %v485 = vadd.f32 %v483, %v484
    %v486 = vrot.slane %v485, 4
    %v487 = vadd.f32 %v485, %v486
    %v488 = vrot.slane %v487, 2
    %v489 = vadd.f32 %v487, %v488
    %v490 = vrot.slane %v489, 1
    %v491 = vadd.f32 %v489, %v490
    %v492 = vrcp.pop %v482
    %v493 = vrcp.pop %v491
    %v494 = vmul.f32 %v467, %v492
    %v495 = vmul.f32 %v469, %v492
    %v496 = vmul.f32 %v471, %v493
    %v497 = vmul.f32 %v473, %v493
    %v498 = vmul.f32 %v494, %v333
    %v499 = vmul.f32 %v495, %v335
    %v500 = vmul.f32 %v496, %v337
    %v501 = vmul.f32 %v497, %v339
    %v502 = vsel %vm273, %v498, 0.0
    %v503 = vsel %vm273, %v499, 0.0
    %v504 = vadd.f32 %v502, %v503
    %v505 = vrot.slane %v504, 4
    %v506 = vadd.f32 %v504, %v505
    %v507 = vrot.slane %v506, 2
    %v508 = vadd.f32 %v506, %v507
    %v509 = vrot.slane %v508, 1
    %v510 = vadd.f32 %v508, %v509
    %v511 = vsel %vm273, %v500, 0.0
    %v512 = vsel %vm273, %v501, 0.0
    %v513 = vadd.f32 %v511, %v512
    %v514 = vrot.slane %v513, 4
    %v515 = vadd.f32 %v513, %v514
    %v516 = vrot.slane %v515, 2
    %v517 = vadd.f32 %v515, %v516
    %v518 = vrot.slane %v517, 1
    %v519 = vadd.f32 %v517, %v518
    %v520 = vmul.f32 %v494, %v510
    %v521 = vmul.f32 %v495, %v510
    %v522 = vmul.f32 %v496, %v519
    %v523 = vmul.f32 %v497, %v519
    %v524 = vadd.f32 %v370, %v520
    %v525 = vadd.f32 %v371, %v521
    %v526 = vadd.f32 %v372, %v522
    %v527 = vadd.f32 %v373, %v523
    %vm528 = vcmask 1041408
    %v529 = vrot.slane %v251, 6
    %v530 = vrot.slane %v256, 6
    %v531 = vsel %vm528, %v529, %v530
    %v532 = vrot.slane %v261, 6
    %v533 = vrot.slane %v266, 6
    %v534 = vsel %vm528, %v532, %v533
    %535 = vrot.lane.b32.xlu0 %v529, 112
    %v536 = vpop.permute.xlu0 %535
    %537 = vrot.lane.b32.xlu0 %v531, 112
    %v538 = vpop.permute.xlu0 %537
    %539 = vrot.lane.b32.xlu0 %v532, 112
    %v540 = vpop.permute.xlu0 %539
    %541 = vrot.lane.b32.xlu0 %v534, 112
    %v542 = vpop.permute.xlu0 %541
    %v547 = vsel %vm528, 0.0, %v536
    %v548 = vsel %vm528, 0.0, %v540
    %v549 = vadd.f32 %v547, 0.0
    %v550 = vadd.f32 %v538, 0.0
    %v551 = vadd.f32 %v548, 0.0
    %v552 = vadd.f32 %v542, 0.0
    %553 = vrot.lane.b32.xlu0 %v375, 108
    %v554 = vpop.permute.xlu0 %553
    %555 = vrot.lane.b32.xlu0 %v377, 108
    %v556 = vpop.permute.xlu0 %555
    %557 = vrot.lane.b32.xlu0 %v378, 108
    %v558 = vpop.permute.xlu0 %557
    %559 = vrot.lane.b32.xlu0 %v380, 108
    %v560 = vpop.permute.xlu0 %559
    %v565 = vsel %vm374, 0.0, %v554
    %v566 = vsel %vm374, 0.0, %v558
    %v567 = vadd.f32 %v549, %v565
    %v568 = vadd.f32 %v550, %v556
    %v569 = vadd.f32 %v551, %v566
    %v570 = vadd.f32 %v552, %v560
    %571 = vrot.lane.b32.xlu0 %v251, 104
    %v572 = vpop.permute.xlu0 %571
    %573 = vrot.lane.b32.xlu0 %v256, 104
    %v574 = vpop.permute.xlu0 %573
    %575 = vrot.lane.b32.xlu0 %v261, 104
    %v576 = vpop.permute.xlu0 %575
    %577 = vrot.lane.b32.xlu0 %v266, 104
    %v578 = vpop.permute.xlu0 %577
    %v583 = vadd.f32 %v567, %v572
    %v584 = vadd.f32 %v568, %v574
    %v585 = vadd.f32 %v569, %v576
    %v586 = vadd.f32 %v570, %v578
    %587 = vrot.lane.b32.xlu0 %v418, 100
    %v588 = vpop.permute.xlu0 %587
    %589 = vrot.lane.b32.xlu0 %v424, 100
    %v590 = vpop.permute.xlu0 %589
    %591 = vrot.lane.b32.xlu0 %v421, 100
    %v592 = vpop.permute.xlu0 %591
    %593 = vrot.lane.b32.xlu0 %v425, 100
    %v594 = vpop.permute.xlu0 %593
    %v599 = vadd.f32 %v583, %v588
    %v600 = vadd.f32 %v584, %v590
    %v601 = vadd.f32 %v585, %v592
    %v602 = vadd.f32 %v586, %v594
    %vm603 = vcmask 1045504
    %v604 = vrot.slane %v251, 2
    %v605 = vrot.slane %v256, 2
    %v606 = vsel %vm603, %v604, %v605
    %v607 = vrot.slane %v261, 2
    %v608 = vrot.slane %v266, 2
    %v609 = vsel %vm603, %v607, %v608
    %v612 = vsel %vm603, %v605, 0.0
    %v613 = vsel %vm603, %v608, 0.0
    %616 = vrot.lane.b32.xlu0 %v606, 96
    %v617 = vpop.permute.xlu0 %616
    %618 = vrot.lane.b32.xlu0 %v612, 96
    %v619 = vpop.permute.xlu0 %618
    %620 = vrot.lane.b32.xlu0 %v609, 96
    %v621 = vpop.permute.xlu0 %620
    %622 = vrot.lane.b32.xlu0 %v613, 96
    %v623 = vpop.permute.xlu0 %622
    %v628 = vadd.f32 %v599, %v617
    %v629 = vadd.f32 %v600, %v619
    %v630 = vadd.f32 %v601, %v621
    %v631 = vadd.f32 %v602, %v623
    %v632 = vsel %vm273, %v628, -inf
    %v633 = vsel %vm273, %v629, -inf
    %v634 = vmax.f32 %v632, %v633
    %v635 = vrot.slane %v634, 4
    %v636 = vmax.f32 %v634, %v635
    %v637 = vrot.slane %v636, 2
    %v638 = vmax.f32 %v636, %v637
    %v639 = vrot.slane %v638, 1
    %v640 = vmax.f32 %v638, %v639
    %v641 = vsel %vm273, %v630, -inf
    %v642 = vsel %vm273, %v631, -inf
    %v643 = vmax.f32 %v641, %v642
    %v644 = vrot.slane %v643, 4
    %v645 = vmax.f32 %v643, %v644
    %v646 = vrot.slane %v645, 2
    %v647 = vmax.f32 %v645, %v646
    %v648 = vrot.slane %v647, 1
    %v649 = vmax.f32 %v647, %v648
    %v650 = vsub.f32 %v628, %v640
    %v651 = vsub.f32 %v629, %v640
    %v652 = vsub.f32 %v630, %v649
    %v653 = vsub.f32 %v631, %v649
    %v654 = vmul.f32 %v650, 1.442695
    %v655 = vpow.pop %v654
    %v656 = vmul.f32 %v651, 1.442695
    %v657 = vpow.pop %v656
    %v658 = vmul.f32 %v652, 1.442695
    %v659 = vpow.pop %v658
    %v660 = vmul.f32 %v653, 1.442695
    %v661 = vpow.pop %v660
    %v662 = vsel %vm273, %v655, 0.0
    %v663 = vsel %vm273, %v657, 0.0
    %v664 = vadd.f32 %v662, %v663
    %v665 = vrot.slane %v664, 4
    %v666 = vadd.f32 %v664, %v665
    %v667 = vrot.slane %v666, 2
    %v668 = vadd.f32 %v666, %v667
    %v669 = vrot.slane %v668, 1
    %v670 = vadd.f32 %v668, %v669
    %v671 = vsel %vm273, %v659, 0.0
    %v672 = vsel %vm273, %v661, 0.0
    %v673 = vadd.f32 %v671, %v672
    %v674 = vrot.slane %v673, 4
    %v675 = vadd.f32 %v673, %v674
    %v676 = vrot.slane %v675, 2
    %v677 = vadd.f32 %v675, %v676
    %v678 = vrot.slane %v677, 1
    %v679 = vadd.f32 %v677, %v678
    %v680 = vrcp.pop %v670
    %v681 = vrcp.pop %v679
    %v682 = vmul.f32 %v655, %v680
    %v683 = vmul.f32 %v657, %v680
    %v684 = vmul.f32 %v659, %v681
    %v685 = vmul.f32 %v661, %v681
    %v686 = vmul.f32 %v682, %v333
    %v687 = vmul.f32 %v683, %v335
    %v688 = vmul.f32 %v684, %v337
    %v689 = vmul.f32 %v685, %v339
    %v690 = vsel %vm273, %v686, 0.0
    %v691 = vsel %vm273, %v687, 0.0
    %v692 = vadd.f32 %v690, %v691
    %v693 = vrot.slane %v692, 4
    %v694 = vadd.f32 %v692, %v693
    %v695 = vrot.slane %v694, 2
    %v696 = vadd.f32 %v694, %v695
    %v697 = vrot.slane %v696, 1
    %v698 = vadd.f32 %v696, %v697
    %v699 = vsel %vm273, %v688, 0.0
    %v700 = vsel %vm273, %v689, 0.0
    %v701 = vadd.f32 %v699, %v700
    %v702 = vrot.slane %v701, 4
    %v703 = vadd.f32 %v701, %v702
    %v704 = vrot.slane %v703, 2
    %v705 = vadd.f32 %v703, %v704
    %v706 = vrot.slane %v705, 1
    %v707 = vadd.f32 %v705, %v706
    %v708 = vmul.f32 %v682, %v698
    %v709 = vmul.f32 %v683, %v698
    %v710 = vmul.f32 %v684, %v707
    %v711 = vmul.f32 %v685, %v707
    %v712 = vadd.f32 %v524, %v708
    %v713 = vadd.f32 %v525, %v709
    %v714 = vadd.f32 %v526, %v710
    %v715 = vadd.f32 %v527, %v711
    %716 = vxpose.xlu0.b32.start [1/16] %v712, 128
    %717 = vxpose.xlu0.b32.cont [2/16] %v713, 128
    %718 = vxpose.xlu0.b32.cont [3/16] 0.0, 128
    %719 = vxpose.xlu0.b32.cont [4/16] 0.0, 128
    %720 = vxpose.xlu0.b32.cont [5/16] 0.0, 128
    %721 = vxpose.xlu0.b32.cont [6/16] 0.0, 128
    %722 = vxpose.xlu0.b32.cont [7/16] 0.0, 128
    %723 = vxpose.xlu0.b32.cont [8/16] 0.0, 128
    %724 = vxpose.xlu0.b32.cont [9/16] 0.0, 128
    %725 = vxpose.xlu0.b32.cont [10/16] 0.0, 128
    %726 = vxpose.xlu0.b32.cont [11/16] 0.0, 128
    %727 = vxpose.xlu0.b32.cont [12/16] 0.0, 128
    %728 = vxpose.xlu0.b32.cont [13/16] 0.0, 128
    %729 = vxpose.xlu0.b32.cont [14/16] 0.0, 128
    %730 = vxpose.xlu0.b32.cont [15/16] 0.0, 128
    %731 = vxpose.xlu0.b32.end [16/16] 0.0, 128
    %v732 = vpop.trf.xlu0
    %v733 = vpop.trf.xlu0
    %v734 = vpop.trf.xlu0
    %v735 = vpop.trf.xlu0
    %v736 = vpop.trf.xlu0
    %v737 = vpop.trf.xlu0
    %v738 = vpop.trf.xlu0
    %v739 = vpop.trf.xlu0
    %v740 = vpop.trf.xlu0
    %v741 = vpop.trf.xlu0
    %v742 = vpop.trf.xlu0
    %v743 = vpop.trf.xlu0
    %v744 = vpop.trf.xlu0
    %v745 = vpop.trf.xlu0
    %v746 = vpop.trf.xlu0
    %v747 = vpop.trf.xlu0
    %748 = vxpose.xlu0.b32.start [1/16] %v714, 128
    %749 = vxpose.xlu0.b32.cont [2/16] %v715, 128
    %750 = vxpose.xlu0.b32.cont [3/16] 0.0, 128
    %751 = vxpose.xlu0.b32.cont [4/16] 0.0, 128
    %752 = vxpose.xlu0.b32.cont [5/16] 0.0, 128
    %753 = vxpose.xlu0.b32.cont [6/16] 0.0, 128
    %754 = vxpose.xlu0.b32.cont [7/16] 0.0, 128
    %755 = vxpose.xlu0.b32.cont [8/16] 0.0, 128
    %756 = vxpose.xlu0.b32.cont [9/16] 0.0, 128
    %757 = vxpose.xlu0.b32.cont [10/16] 0.0, 128
    %758 = vxpose.xlu0.b32.cont [11/16] 0.0, 128
    %759 = vxpose.xlu0.b32.cont [12/16] 0.0, 128
    %760 = vxpose.xlu0.b32.cont [13/16] 0.0, 128
    %761 = vxpose.xlu0.b32.cont [14/16] 0.0, 128
    %762 = vxpose.xlu0.b32.cont [15/16] 0.0, 128
    %763 = vxpose.xlu0.b32.end [16/16] 0.0, 128
    %v764 = vpop.trf.xlu0
    %v765 = vpop.trf.xlu0
    %v766 = vpop.trf.xlu0
    %v767 = vpop.trf.xlu0
    %v768 = vpop.trf.xlu0
    %v769 = vpop.trf.xlu0
    %v770 = vpop.trf.xlu0
    %v771 = vpop.trf.xlu0
    %v772 = vpop.trf.xlu0
    %v773 = vpop.trf.xlu0
    %v774 = vpop.trf.xlu0
    %v775 = vpop.trf.xlu0
    %v776 = vpop.trf.xlu0
    %v777 = vpop.trf.xlu0
    %v778 = vpop.trf.xlu0
    %v779 = vpop.trf.xlu0
    %vm780 = vcmask 125952
    %781 = vst.msk [vmem:[#allocation8] sm:$0xf] %vm780, %v732
    %782 = vst.msk [vmem:[#allocation8 + $0x4] sm:$0xf] %vm780, %v764
    %v783 = vld [vmem:[%s3] sm:$0xf]
    %v785 = vsel %vm273, %v712, 0
    %v788 = vsel %vm273, %v713, 0
    %v791 = vsel %vm273, %v714, 0
    %v794 = vsel %vm273, %v715, 0
    %vm796 = vcmask 1043456
    %v798 = vsel %vm796, %v783, 0
    %800 = vmatprep.subr.mxu0 0.0
    %801 = vmatpush1.msra.mxu0 0.0
    %802 = vmatprep.subr.mxu0 0.0
    %803 = vmatpush1.msra.mxu0 0.0
    %804 = vmatprep.subr.mxu0 0.0
    %805 = vmatpush1.msra.mxu0 0.0
    %806 = vmatprep.subr.mxu0 0.0
    %807 = vmatpush1.msra.mxu0 0.0
    %808 = vmatprep.subr.mxu0 0.0
    %809 = vmatpush1.msra.mxu0 0.0
    %810 = vmatprep.subr.mxu0 0.0
    %811 = vmatpush1.msra.mxu0 0.0
    %812 = vmatprep.subr.mxu0 0.0
    %813 = vmatpush1.msra.mxu0 0.0
    %814 = vmatprep.subr.mxu0 0.0
    %815 = vmatpush1.msra.mxu0 0.0
    %816 = vmatprep.subr.mxu0 0.0
    %817 = vmatpush1.msra.mxu0 0.0
    %818 = vmatprep.subr.mxu0 0.0
    %819 = vmatpush1.msra.mxu0 0.0
    %820 = vmatprep.subr.mxu0 0.0
    %821 = vmatpush1.msra.mxu0 0.0
    %822 = vmatprep.subr.mxu0 0.0
    %823 = vmatpush1.msra.mxu0 0.0
    %824 = vmatprep.subr.mxu0 0.0
    %825 = vmatpush1.msra.mxu0 0.0
    %826 = vmatprep.subr.mxu0 0.0
    %827 = vmatpush1.msra.mxu0 0.0
    %828 = vmatprep.subr.mxu0 0.0
    %829 = vmatpush1.msra.mxu0 0.0
    %830 = vmatprep.subr.mxu0 0.0
    %831 = vmatpush1.msra.mxu0 %v798
    %832 = vmatprep.subr.mxu0 0.0
    %833 = vmatpush2.msra.mxu0 0.0
    %834 = vmatprep.subr.mxu0 0.0
    %835 = vmatpush2.msra.mxu0 0.0
    %836 = vmatprep.subr.mxu0 0.0
    %837 = vmatpush2.msra.mxu0 0.0
    %838 = vmatprep.subr.mxu0 0.0
    %839 = vmatpush2.msra.mxu0 0.0
    %840 = vmatprep.subr.mxu0 0.0
    %841 = vmatpush2.msra.mxu0 0.0
    %842 = vmatprep.subr.mxu0 0.0
    %843 = vmatpush2.msra.mxu0 0.0
    %844 = vmatprep.subr.mxu0 0.0
    %845 = vmatpush2.msra.mxu0 0.0
    %846 = vmatprep.subr.mxu0 0.0
    %847 = vmatpush2.msra.mxu0 0.0
    %848 = vmatprep.subr.mxu0 0.0
    %849 = vmatpush2.msra.mxu0 0.0
    %850 = vmatprep.subr.mxu0 0.0
    %851 = vmatpush2.msra.mxu0 0.0
    %852 = vmatprep.subr.mxu0 0.0
    %853 = vmatpush2.msra.mxu0 0.0
    %854 = vmatprep.subr.mxu0 0.0
    %855 = vmatpush2.msra.mxu0 0.0
    %856 = vmatprep.subr.mxu0 0.0
    %857 = vmatpush2.msra.mxu0 0.0
    %858 = vmatprep.subr.mxu0 0.0
    %859 = vmatpush2.msra.mxu0 0.0
    %860 = vmatprep.subr.mxu0 0.0
    %861 = vmatpush2.msra.mxu0 0.0
    %862 = vmatprep.subr.mxu0 0.0
    %863 = vmatpush2.msra.mxu0 0.0
    %864 = vmatprep.mubr.f32.mxu0 0.0
    %865 = vmatmul.mubr.f32.gmra.mxu0 %v785
    %v866 = vpop.f32.mrf.mxu0
    %v867 = vadd.f32 0.0, %v866
    %v868 = vpop.f32.mrf.mxu0
    %869 = vmatprep.mubr.f32.mxu0 0.0
    %870 = vmatmul.mubr.f32.gmra.mxu0 %v788
    %v871 = vpop.f32.mrf.mxu0
    %v872 = vadd.f32 0.0, %v871
    %v873 = vpop.f32.mrf.mxu0
    %874 = vmatprep.mubr.f32.mxu0 0.0
    %875 = vmatmul.mubr.f32.gmra.mxu0 %v791
    %v876 = vpop.f32.mrf.mxu0
    %v877 = vadd.f32 0.0, %v876
    %v878 = vpop.f32.mrf.mxu0
    %879 = vmatprep.mubr.f32.mxu0 0.0
    %880 = vmatmul.mubr.f32.gmra.mxu0 %v794
    %v881 = vpop.f32.mrf.mxu0
    %v882 = vadd.f32 0.0, %v881
    %v883 = vpop.f32.mrf.mxu0
    %884 = vdwg.mxu0
    %v885 = vmul.f32 %v867, %v150
    %v886 = vmul.f32 %v872, %v155
    %v887 = vmul.f32 %v877, %v160
    %v888 = vmul.f32 %v882, %v165
    %v889 = vsel %vm70, %v885, 0.0
    %v890 = vsel %vm70, %v886, 0.0
    %v891 = vadd.f32 %v889, %v890
    %v892 = vrot.slane %v891, 4
    %v893 = vadd.f32 %v891, %v892
    %v894 = vrot.slane %v893, 2
    %v895 = vadd.f32 %v893, %v894
    %v896 = vrot.slane %v895, 1
    %v897 = vadd.f32 %v895, %v896
    %v898 = vsel %vm70, %v887, 0.0
    %v899 = vsel %vm70, %v888, 0.0
    %v900 = vadd.f32 %v898, %v899
    %v901 = vrot.slane %v900, 4
    %v902 = vadd.f32 %v900, %v901
    %v903 = vrot.slane %v902, 2
    %v904 = vadd.f32 %v902, %v903
    %v905 = vrot.slane %v904, 1
    %v906 = vadd.f32 %v904, %v905
    %vm909 = vcmask 1041409
    %v910 = vsel %vm909, %v906, %v897
    %vm912 = vcmask 254976
    %913 = vst.msk [vmem:[#allocation9] sm:$0x3] %vm912, %v910
    // Predicated region
    $region30: #{tpu_custom_call.1} parent=1 // pred_check
      _
    $region31: #{tpu_custom_call.1} parent=1 // pred_check_branch
      %915 = sbr.rel (0) target = $region33
    $region32: #{tpu_custom_call.1} parent=1 // pred_region
      %s917 = ssub.s32 128, 128
      %918 = vsyncadd [#allocation4], %s917
      %s919 = sshll.u32 [#allocation8], 4
      %s920 = int_to_ptr.vmem [resolvable:$true] %s919
      %925 = dma.vmem_to_hbm [thread:$0]  %s920, 128, %s4, [#allocation4], 64, 64, 4
    $region33: #{tpu_custom_call.1} parent=1 // pred_fallthru
      _
    // Predicated region
    $region34: #{tpu_custom_call.1} parent=1 // pred_check
      _
    $region35: #{tpu_custom_call.1} parent=1 // pred_check_branch
      %927 = sbr.rel (0) target = $region37
    $region36: #{tpu_custom_call.1} parent=1 // pred_region
      %s929 = ssub.s32 32, 32
      %930 = vsyncadd [#allocation10], %s929
      %s932 = sshll.u32 [#allocation9], 4
      %s933 = int_to_ptr.vmem [resolvable:$true] %s932
      %935 = dma.vmem_to_hbm [thread:$0]  %s933, 32, %s5, [#allocation10]
    $region37: #{tpu_custom_call.1} parent=1 // pred_fallthru
      _
    // Predicated region
    $region38: #{tpu_custom_call.1} parent=1 // pred_check
      _
    $region39: #{tpu_custom_call.1} parent=1 // pred_check_branch
      %937 = sbr.rel (0) target = $region41
    $region40: #{tpu_custom_call.1} parent=1 // pred_region
      %938 = dma.done [#allocation4], 128
    $region41: #{tpu_custom_call.1} parent=1 // pred_fallthru
      _
    // Predicated region
    $region42: #{tpu_custom_call.1} parent=1 // pred_check
      _
    $region43: #{tpu_custom_call.1} parent=1 // pred_check_branch
      %940 = sbr.rel (0) target = $region45
    $region44: #{tpu_custom_call.1} parent=1 // pred_region
      %941 = dma.done [#allocation10], 32
    $region45: #{tpu_custom_call.1} parent=1 // pred_fallthru
      _
    %942 = vsyncpa [#allocation3], 1
    %943 = vsyncpa [#allocation6], 1
    %944 = vsyncpa [#allocation4], 1
    %945 = vsyncpa [#allocation10], 1

</llo_original>
